<compile_context>
chip_gen: v7x
topology: tpu7x:2x2x1
jax: 0.10.0
libtpu: 0.0.40
codegen_flags: <defaults>
</compile_context>

<pallas_src>
import jax
import jax.numpy as jnp
from jax.experimental import pallas as pl
from jax.experimental.pallas import tpu as pltpu


def mlp_kernel(user_ref, item_ref,
               w1u_ref, w1i_ref, b1_ref,
               w2_ref, b2_ref,
               w3_ref, b3_ref,
               wl_ref, bl_ref,
               out_ref):
    # First layer: cat([user, item]) @ W1.T  ==  user @ W1u + item @ W1i
    h = jnp.dot(user_ref[...].astype(w1u_ref.dtype), w1u_ref[...],
                preferred_element_type=jnp.float32)
    h = h + jnp.dot(item_ref[...].astype(w1i_ref.dtype), w1i_ref[...],
                    preferred_element_type=jnp.float32)
    h = jax.nn.sigmoid(h + b1_ref[...])

    # Hidden layer 1
    h = jnp.dot(h.astype(w2_ref.dtype), w2_ref[...],
                preferred_element_type=jnp.float32)
    h = jax.nn.sigmoid(h + b2_ref[...])

    # Hidden layer 2
    h = jnp.dot(h.astype(w3_ref.dtype), w3_ref[...],
                preferred_element_type=jnp.float32)
    h = jax.nn.sigmoid(h + b3_ref[...])

    # Last layer (H -> 1): VPU multiply + XLU lane reduce instead of a 1-column
    # MXU matmul; store as a lane-dense (1, tm) row (single unmasked vst).
    r = jnp.sum(h * wl_ref[...].astype(jnp.float32), axis=-1)     # (tm,)
    out_ref[...] = r[None, :] + bl_ref[...]                       # (1, tm)


def prepare_params(params, e_user, compute_dtype=jnp.float32):
    """One-time conversion from PyTorch (out,in) layout to kernel layout."""
    (w1, b1), (w2, b2), (w3, b3), (wl, bl) = params
    w1_t = jnp.asarray(w1).T                                      # (emsize, H), done once
    w1u = w1_t[:e_user].astype(compute_dtype)                     # (E_u, H)
    w1i = w1_t[e_user:].astype(compute_dtype)                     # (E_i, H)
    return (
        w1u, w1i, b1.reshape(1, -1).astype(jnp.float32),
        jnp.asarray(w2).T.astype(compute_dtype), b2.reshape(1, -1).astype(jnp.float32),
        jnp.asarray(w3).T.astype(compute_dtype), b3.reshape(1, -1).astype(jnp.float32),
        jnp.asarray(wl).astype(compute_dtype),                    # (1, H) row, no transpose
        bl.reshape(1, 1).astype(jnp.float32),
    )


def mlp_forward(user, item, kparams, *, block_rows=512):
    """user: (B, E_u) f32, item: (B, E_i) f32; returns rating (B,) f32."""
    B, e_u = user.shape
    _, e_i = item.shape
    w1u, w1i, b1, w2, b2, w3, b3, wl, bl = kparams
    H = w2.shape[1]

    # Adaptive batch tile: don't pad a tiny batch all the way to block_rows,
    # but keep the output lane dim a multiple of 128 for dense stores.
    tm = min(block_rows, ((B + 127) // 128) * 128)
    num_tiles = pl.cdiv(B, tm)
    b_pad = num_tiles * tm
    if b_pad != B:
        user = jnp.pad(user, ((0, b_pad - B), (0, 0)))
        item = jnp.pad(item, ((0, b_pad - B), (0, 0)))

    def const_spec(arr):
        # Full-array block, same block every grid step -> stays VMEM-resident.
        return pl.BlockSpec(arr.shape, lambda i: (0, 0))

    flops = 2 * b_pad * (e_u * H + e_i * H + 2 * H * H + H)
    transcendentals = 3 * b_pad * H
    bytes_accessed = (
        4 * (b_pad * (e_u + e_i) + b_pad)
        + sum(int(a.size) * a.dtype.itemsize
              for a in (w1u, w1i, b1, w2, b2, w3, b3, wl, bl))
    )

    out = pl.pallas_call(
        mlp_kernel,
        out_shape=jax.ShapeDtypeStruct((num_tiles, tm), jnp.float32),
        grid_spec=pltpu.PrefetchScalarGridSpec(
            num_scalar_prefetch=0,
            grid=(num_tiles,),
            in_specs=[
                pl.BlockSpec((tm, e_u), lambda i: (i, 0)),   # user tile (pipelined)
                pl.BlockSpec((tm, e_i), lambda i: (i, 0)),   # item tile (pipelined)
                const_spec(w1u), const_spec(w1i), const_spec(b1),
                const_spec(w2), const_spec(b2),
                const_spec(w3), const_spec(b3),
                const_spec(wl), const_spec(bl),
            ],
            out_specs=pl.BlockSpec((1, tm), lambda i: (i, 0)),  # lane-dense output row
        ),
        compiler_params=pltpu.CompilerParams(
            dimension_semantics=("parallel",),       # megacore split on v7x
            vmem_limit_bytes=32 * 1024 * 1024,       # headroom within v7x's 64 MiB
        ),
        cost_estimate=pl.CostEstimate(
            flops=flops,
            transcendentals=transcendentals,
            bytes_accessed=bytes_accessed,
        ),
    )(user, item, w1u, w1i, b1, w2, b2, w3, b3, wl, bl)

    # Lane-dense (num_tiles, tm) slab -> (B,) rating (torch.squeeze equivalent).
    return out.reshape(b_pad)[:B]


def init_params(key, emsize, hidden_size, num_layers=2):
    """Deterministic init mirroring MLP.init_weights: uniform(-0.1, 0.1), zero bias."""
    initrange = 0.1
    keys = jax.random.split(key, num_layers + 2)

    def lin(k, in_f, out_f):
        w = jax.random.uniform(k, (out_f, in_f), jnp.float32,
                               minval=-initrange, maxval=initrange)
        b = jnp.zeros((out_f,), jnp.float32)
        return w, b

    first = lin(keys[0], emsize, hidden_size)
    hidden1 = lin(keys[1], hidden_size, hidden_size)
    hidden2 = lin(keys[2], hidden_size, hidden_size)
    last = lin(keys[3], hidden_size, 1)
    return first, hidden1, hidden2, last


def reference_forward(user, item, params):
    """Pure-JAX reference matching the PyTorch module."""
    (w1, b1), (w2, b2), (w3, b3), (wl, bl) = params
    x = jnp.concatenate([user, item], axis=1)
    h = jax.nn.sigmoid(x @ w1.T + b1)
    h = jax.nn.sigmoid(h @ w2.T + b2)
    h = jax.nn.sigmoid(h @ w3.T + b3)
    return jnp.squeeze(h @ wl.T + bl)


if __name__ == "__main__":
    key = jax.random.PRNGKey(0)
    k_u, k_i, k_p = jax.random.split(key, 3)

    # Small shapes: user + item embeddings each 16-dim -> emsize=32, hidden=32.
    B, E_half, H = 8, 16, 32
    user = jax.random.normal(k_u, (B, E_half), jnp.float32)
    item = jax.random.normal(k_i, (B, E_half), jnp.float32)

    params = init_params(k_p, emsize=2 * E_half, hidden_size=H, num_layers=2)
    # f32 kept here so the check matches the f32 reference exactly;
    # pass compute_dtype=jnp.bfloat16 on v6e/v7x to halve matmul operand bytes.
    kparams = prepare_params(params, e_user=E_half, compute_dtype=jnp.float32)

    fwd = jax.jit(lambda u, i: mlp_forward(u, i, kparams, block_rows=512))
    rating = jax.block_until_ready(fwd(user, item))

    ref = reference_forward(user, item, params)
    assert rating.shape == (B,), rating.shape
    assert jnp.allclose(rating, ref, atol=1e-4, rtol=1e-4), (rating, ref)

    print("KERNEL_OK")
</pallas_src>

<mosaic_0001>
module attributes {stable_mosaic.version = 11 : i64} {
  func.func @mlp_kernel(%arg0: i32, %arg1: memref<128x16xf32, #tpu.memory_space<vmem>>, %arg2: memref<128x16xf32, #tpu.memory_space<vmem>>, %arg3: memref<16x32xf32, #tpu.memory_space<vmem>>, %arg4: memref<16x32xf32, #tpu.memory_space<vmem>>, %arg5: memref<1x32xf32, #tpu.memory_space<vmem>>, %arg6: memref<32x32xf32, #tpu.memory_space<vmem>>, %arg7: memref<1x32xf32, #tpu.memory_space<vmem>>, %arg8: memref<32x32xf32, #tpu.memory_space<vmem>>, %arg9: memref<1x32xf32, #tpu.memory_space<vmem>>, %arg10: memref<1x32xf32, #tpu.memory_space<vmem>>, %arg11: memref<1x1xf32, #tpu.memory_space<vmem>>, %arg12: memref<1x128xf32, #tpu.memory_space<vmem>>) attributes {dimension_semantics = [#tpu.dimension_semantics<parallel>], iteration_bounds = array<i64: 1>, scalar_prefetch = 0 : i64, scratch_operands = 0 : i64, tpu.core_type = #tpu.core_type<tc>, window_params = [{transform_indices = @transform_0, window_bounds = array<i64: 128, 16>}, {transform_indices = @transform_1, window_bounds = array<i64: 128, 16>}, {pipeline_mode = #tpu.pipeline_mode<synchronous>, transform_indices = @transform_2, window_bounds = array<i64: 16, 32>}, {pipeline_mode = #tpu.pipeline_mode<synchronous>, transform_indices = @transform_3, window_bounds = array<i64: 16, 32>}, {pipeline_mode = #tpu.pipeline_mode<synchronous>, transform_indices = @transform_4, window_bounds = array<i64: 1, 32>}, {pipeline_mode = #tpu.pipeline_mode<synchronous>, transform_indices = @transform_5, window_bounds = array<i64: 32, 32>}, {pipeline_mode = #tpu.pipeline_mode<synchronous>, transform_indices = @transform_6, window_bounds = array<i64: 1, 32>}, {pipeline_mode = #tpu.pipeline_mode<synchronous>, transform_indices = @transform_7, window_bounds = array<i64: 32, 32>}, {pipeline_mode = #tpu.pipeline_mode<synchronous>, transform_indices = @transform_8, window_bounds = array<i64: 1, 32>}, {pipeline_mode = #tpu.pipeline_mode<synchronous>, transform_indices = @transform_9, window_bounds = array<i64: 1, 32>}, {pipeline_mode = #tpu.pipeline_mode<synchronous>, transform_indices = @transform_10, window_bounds = array<i64: 1, 1>}, {transform_indices = @transform_11, window_bounds = array<i64: 1, 128>}]} {
    %c0 = arith.constant 0 : index
    %c0_0 = arith.constant 0 : index
    %0 = vector.load %arg1[%c0, %c0_0] : memref<128x16xf32, #tpu.memory_space<vmem>>, vector<128x16xf32>
    %c0_1 = arith.constant 0 : index
    %c0_2 = arith.constant 0 : index
    %1 = vector.load %arg3[%c0_1, %c0_2] : memref<16x32xf32, #tpu.memory_space<vmem>>, vector<16x32xf32>
    %cst = arith.constant dense<0.000000e+00> : vector<128x32xf32>
    %2 = tpu.matmul %0, %1, %cst {dimension_numbers = #tpu.dot_dimension_numbers<[1], [0], [0], [1], [0, 0, 1, 1], [], []>} : vector<128x16xf32>, vector<16x32xf32>, vector<128x32xf32> -> vector<128x32xf32>
    %c0_3 = arith.constant 0 : index
    %c0_4 = arith.constant 0 : index
    %3 = vector.load %arg2[%c0_3, %c0_4] : memref<128x16xf32, #tpu.memory_space<vmem>>, vector<128x16xf32>
    %c0_5 = arith.constant 0 : index
    %c0_6 = arith.constant 0 : index
    %4 = vector.load %arg4[%c0_5, %c0_6] : memref<16x32xf32, #tpu.memory_space<vmem>>, vector<16x32xf32>
    %cst_7 = arith.constant dense<0.000000e+00> : vector<128x32xf32>
    %5 = tpu.matmul %3, %4, %cst_7 {dimension_numbers = #tpu.dot_dimension_numbers<[1], [0], [0], [1], [0, 0, 1, 1], [], []>} : vector<128x16xf32>, vector<16x32xf32>, vector<128x32xf32> -> vector<128x32xf32>
    %6 = arith.addf %2, %5 : vector<128x32xf32>
    %c0_8 = arith.constant 0 : index
    %c0_9 = arith.constant 0 : index
    %7 = vector.load %arg5[%c0_8, %c0_9] : memref<1x32xf32, #tpu.memory_space<vmem>>, vector<1x32xf32>
    %8 = vector.broadcast %7 : vector<1x32xf32> to vector<128x32xf32>
    %9 = arith.addf %6, %8 : vector<128x32xf32>
    %10 = arith.negf %9 : vector<128x32xf32>
    %11 = math.exp %10 : vector<128x32xf32>
    %cst_10 = arith.constant 1.000000e+00 : f32
    %12 = vector.broadcast %cst_10 : f32 to vector<128x32xf32>
    %13 = arith.addf %12, %11 : vector<128x32xf32>
    %14 = arith.divf %12, %13 : vector<128x32xf32>
    %c0_11 = arith.constant 0 : index
    %c0_12 = arith.constant 0 : index
    %15 = vector.load %arg6[%c0_11, %c0_12] : memref<32x32xf32, #tpu.memory_space<vmem>>, vector<32x32xf32>
    %cst_13 = arith.constant dense<0.000000e+00> : vector<128x32xf32>
    %16 = tpu.matmul %14, %15, %cst_13 {dimension_numbers = #tpu.dot_dimension_numbers<[1], [0], [0], [1], [0, 0, 1, 1], [], []>} : vector<128x32xf32>, vector<32x32xf32>, vector<128x32xf32> -> vector<128x32xf32>
    %c0_14 = arith.constant 0 : index
    %c0_15 = arith.constant 0 : index
    %17 = vector.load %arg7[%c0_14, %c0_15] : memref<1x32xf32, #tpu.memory_space<vmem>>, vector<1x32xf32>
    %18 = vector.broadcast %17 : vector<1x32xf32> to vector<128x32xf32>
    %19 = arith.addf %16, %18 : vector<128x32xf32>
    %20 = arith.negf %19 : vector<128x32xf32>
    %21 = math.exp %20 : vector<128x32xf32>
    %cst_16 = arith.constant 1.000000e+00 : f32
    %22 = vector.broadcast %cst_16 : f32 to vector<128x32xf32>
    %23 = arith.addf %22, %21 : vector<128x32xf32>
    %24 = arith.divf %22, %23 : vector<128x32xf32>
    %c0_17 = arith.constant 0 : index
    %c0_18 = arith.constant 0 : index
    %25 = vector.load %arg8[%c0_17, %c0_18] : memref<32x32xf32, #tpu.memory_space<vmem>>, vector<32x32xf32>
    %cst_19 = arith.constant dense<0.000000e+00> : vector<128x32xf32>
    %26 = tpu.matmul %24, %25, %cst_19 {dimension_numbers = #tpu.dot_dimension_numbers<[1], [0], [0], [1], [0, 0, 1, 1], [], []>} : vector<128x32xf32>, vector<32x32xf32>, vector<128x32xf32> -> vector<128x32xf32>
    %c0_20 = arith.constant 0 : index
    %c0_21 = arith.constant 0 : index
    %27 = vector.load %arg9[%c0_20, %c0_21] : memref<1x32xf32, #tpu.memory_space<vmem>>, vector<1x32xf32>
    %28 = vector.broadcast %27 : vector<1x32xf32> to vector<128x32xf32>
    %29 = arith.addf %26, %28 : vector<128x32xf32>
    %30 = arith.negf %29 : vector<128x32xf32>
    %31 = math.exp %30 : vector<128x32xf32>
    %cst_22 = arith.constant 1.000000e+00 : f32
    %32 = vector.broadcast %cst_22 : f32 to vector<128x32xf32>
    %33 = arith.addf %32, %31 : vector<128x32xf32>
    %34 = arith.divf %32, %33 : vector<128x32xf32>
    %c0_23 = arith.constant 0 : index
    %c0_24 = arith.constant 0 : index
    %35 = vector.load %arg10[%c0_23, %c0_24] : memref<1x32xf32, #tpu.memory_space<vmem>>, vector<1x32xf32>
    %36 = vector.broadcast %35 : vector<1x32xf32> to vector<128x32xf32>
    %37 = arith.mulf %34, %36 : vector<128x32xf32>
    %cst_25 = arith.constant dense<0.000000e+00> : vector<128xf32>
    %38 = vector.multi_reduction <add>, %37, %cst_25 [1] : vector<128x32xf32> to vector<128xf32>
    %39 = vector.shape_cast %38 : vector<128xf32> to vector<1x128xf32>
    %c0_26 = arith.constant 0 : index
    %c0_27 = arith.constant 0 : index
    %40 = vector.load %arg11[%c0_26, %c0_27] : memref<1x1xf32, #tpu.memory_space<vmem>>, vector<1x1xf32>
    %41 = vector.broadcast %40 : vector<1x1xf32> to vector<1x128xf32>
    %42 = arith.addf %39, %41 : vector<1x128xf32>
    %c0_28 = arith.constant 0 : index
    %c0_29 = arith.constant 0 : index
    %43 = vector.load %arg12[%c0_28, %c0_29] : memref<1x128xf32, #tpu.memory_space<vmem>>, vector<1x128xf32>
    tpu.vector_store %arg12[%c0_28, %c0_29], %42 {strides = array<i32>} : memref<1x128xf32, #tpu.memory_space<vmem>>, vector<1x128xf32>,
    return
  }
  func.func @transform_0(%arg0: i32) -> (i32, i32) {
    %c0_i32 = arith.constant 0 : i32
    %c0_i32_0 = arith.constant 0 : i32
    return %arg0, %c0_i32 : i32, i32
  }
  func.func @transform_1(%arg0: i32) -> (i32, i32) {
    %c0_i32 = arith.constant 0 : i32
    %c0_i32_0 = arith.constant 0 : i32
    return %arg0, %c0_i32 : i32, i32
  }
  func.func @transform_2(%arg0: i32) -> (i32, i32) {
    %c0_i32 = arith.constant 0 : i32
    %c0_i32_0 = arith.constant 0 : i32
    %c0_i32_1 = arith.constant 0 : i32
    return %c0_i32, %c0_i32_0 : i32, i32
  }
  func.func @transform_3(%arg0: i32) -> (i32, i32) {
    %c0_i32 = arith.constant 0 : i32
    %c0_i32_0 = arith.constant 0 : i32
    %c0_i32_1 = arith.constant 0 : i32
    return %c0_i32, %c0_i32_0 : i32, i32
  }
  func.func @transform_4(%arg0: i32) -> (i32, i32) {
    %c0_i32 = arith.constant 0 : i32
    %c0_i32_0 = arith.constant 0 : i32
    %c0_i32_1 = arith.constant 0 : i32
    return %c0_i32, %c0_i32_0 : i32, i32
  }
  func.func @transform_5(%arg0: i32) -> (i32, i32) {
    %c0_i32 = arith.constant 0 : i32
    %c0_i32_0 = arith.constant 0 : i32
    %c0_i32_1 = arith.constant 0 : i32
    return %c0_i32, %c0_i32_0 : i32, i32
  }
  func.func @transform_6(%arg0: i32) -> (i32, i32) {
    %c0_i32 = arith.constant 0 : i32
    %c0_i32_0 = arith.constant 0 : i32
    %c0_i32_1 = arith.constant 0 : i32
    return %c0_i32, %c0_i32_0 : i32, i32
  }
  func.func @transform_7(%arg0: i32) -> (i32, i32) {
    %c0_i32 = arith.constant 0 : i32
    %c0_i32_0 = arith.constant 0 : i32
    %c0_i32_1 = arith.constant 0 : i32
    return %c0_i32, %c0_i32_0 : i32, i32
  }
  func.func @transform_8(%arg0: i32) -> (i32, i32) {
    %c0_i32 = arith.constant 0 : i32
    %c0_i32_0 = arith.constant 0 : i32
    %c0_i32_1 = arith.constant 0 : i32
    return %c0_i32, %c0_i32_0 : i32, i32
  }
  func.func @transform_9(%arg0: i32) -> (i32, i32) {
    %c0_i32 = arith.constant 0 : i32
    %c0_i32_0 = arith.constant 0 : i32
    %c0_i32_1 = arith.constant 0 : i32
    return %c0_i32, %c0_i32_0 : i32, i32
  }
  func.func @transform_10(%arg0: i32) -> (i32, i32) {
    %c0_i32 = arith.constant 0 : i32
    %c0_i32_0 = arith.constant 0 : i32
    %c0_i32_1 = arith.constant 0 : i32
    return %c0_i32, %c0_i32_0 : i32, i32
  }
  func.func @transform_11(%arg0: i32) -> (i32, i32) {
    %c0_i32 = arith.constant 0 : i32
    %c0_i32_0 = arith.constant 0 : i32
    return %arg0, %c0_i32 : i32, i32
  }
}

</mosaic_0001>

<llo_original>
// kernel: _lambda_.1
$region0: #{_lambda_.1}
  #allocation0 [shape = 'u32[]', space=smem, size = 0x4, offset = 0x4, fixed_abs, tag = 'smem constant byte address 0x4 - core index']
  #allocation1 [shape = 'u32[144,128]{1,0:T(1,128)}', space=vmem, size = 0x12000, scoped, tag = 'internal scratch']
  #allocation2 [shape = 'f32[1,1]{1,0:T(1,128)S(1)}', space=vmem, size = 0x200, scoped, tag = 'scoped memory for _lambda_.1']
  %s0 = inlined_call_operand.vmem [shape: f32[128,16], index: 0, kind: input, shape index: {}]
  %s1 = inlined_call_operand.vmem [shape: f32[128,16], index: 1, kind: input, shape index: {}]
  %s2 = inlined_call_operand.vmem [shape: f32[16,32], index: 2, kind: input, shape index: {}]
  %s3 = inlined_call_operand.vmem [shape: f32[16,32], index: 3, kind: input, shape index: {}]
  %s4 = inlined_call_operand.vmem [shape: f32[1,32], index: 4, kind: input, shape index: {}, may-alias: {4,6,8}]
  %s5 = inlined_call_operand.vmem [shape: f32[32,32], index: 5, kind: input, shape index: {}]
  %s6 = inlined_call_operand.vmem [shape: f32[1,32], index: 6, kind: input, shape index: {}, may-alias: {4,6,8}]
  %s7 = inlined_call_operand.vmem [shape: f32[32,32], index: 7, kind: input, shape index: {}]
  %s8 = inlined_call_operand.vmem [shape: f32[1,32], index: 8, kind: input, shape index: {}, may-alias: {4,6,8}]
  %s9 = inlined_call_operand.vmem [shape: f32[1,32], index: 9, kind: input, shape index: {}]
  %s10 = inlined_call_operand.<no memory space> [shape: f32[1,1], index: 10, kind: input, shape index: {}]
  %s11 = inlined_call_operand.vmem [shape: f32[1,128], index: 11, kind: output, shape index: {}]
  %s12 = sld [smem:[#allocation0]]
  $region54: #{_lambda_.1} parent=0
    _
  %s14 = ssub.s32 1, %s12
  %s15 = scalar_select 0, %s14, %s12
  %v16 = vstv %s10
  %17 = vst [vmem:[#allocation2] sm:$0x1] %v16
  // Predicated region
  $region2: #{_lambda_.1} parent=0 // pred_check
    _
  $region3: #{_lambda_.1} parent=0 // pred_check_branch
    %19 = sbr.rel (0) target = $region5
  $region4: #{_lambda_.1} parent=0 // pred_region
    _
  $region5: #{_lambda_.1} parent=0 // pred_fallthru
    _
  // Predicated region
  $region6: #{_lambda_.1} parent=0 // pred_check
    _
  $region7: #{_lambda_.1} parent=0 // pred_check_branch
    %21 = sbr.rel (0) target = $region9
  $region8: #{_lambda_.1} parent=0 // pred_region
    _
  $region9: #{_lambda_.1} parent=0 // pred_fallthru
    _
  // Predicated region
  $region10: #{_lambda_.1} parent=0 // pred_check
    _
  $region11: #{_lambda_.1} parent=0 // pred_check_branch
    %23 = sbr.rel (0) target = $region13
  $region12: #{_lambda_.1} parent=0 // pred_region
    _
  $region13: #{_lambda_.1} parent=0 // pred_fallthru
    _
  // Predicated region
  $region14: #{_lambda_.1} parent=0 // pred_check
    _
  $region15: #{_lambda_.1} parent=0 // pred_check_branch
    %25 = sbr.rel (0) target = $region17
  $region16: #{_lambda_.1} parent=0 // pred_region
    _
  $region17: #{_lambda_.1} parent=0 // pred_fallthru
    _
  // Predicated region
  $region18: #{_lambda_.1} parent=0 // pred_check
    _
  $region19: #{_lambda_.1} parent=0 // pred_check_branch
    %27 = sbr.rel (0) target = $region21
  $region20: #{_lambda_.1} parent=0 // pred_region
    _
  $region21: #{_lambda_.1} parent=0 // pred_fallthru
    _
  // Predicated region
  $region22: #{_lambda_.1} parent=0 // pred_check
    _
  $region23: #{_lambda_.1} parent=0 // pred_check_branch
    %29 = sbr.rel (0) target = $region25
  $region24: #{_lambda_.1} parent=0 // pred_region
    _
  $region25: #{_lambda_.1} parent=0 // pred_fallthru
    _
  // Predicated region
  $region26: #{_lambda_.1} parent=0 // pred_check
    _
  $region27: #{_lambda_.1} parent=0 // pred_check_branch
    %31 = sbr.rel (0) target = $region29
  $region28: #{_lambda_.1} parent=0 // pred_region
    _
  $region29: #{_lambda_.1} parent=0 // pred_fallthru
    _
  // Predicated region
  $region30: #{_lambda_.1} parent=0 // pred_check
    _
  $region31: #{_lambda_.1} parent=0 // pred_check_branch
    %33 = sbr.rel (0) target = $region33
  $region32: #{_lambda_.1} parent=0 // pred_region
    _
  $region33: #{_lambda_.1} parent=0 // pred_fallthru
    _
  // Predicated region
  $region34: #{_lambda_.1} parent=0 // pred_check
    _
  $region35: #{_lambda_.1} parent=0 // pred_check_branch
    %35 = sbr.rel (0) target = $region37
  $region36: #{_lambda_.1} parent=0 // pred_region
    _
  $region37: #{_lambda_.1} parent=0 // pred_fallthru
    _
  // Predicated region
  $region38: #{_lambda_.1} parent=0 // pred_check
    _
  $region39: #{_lambda_.1} parent=0 // pred_check_branch
    %37 = sbr.rel (0) target = $region41
  $region40: #{_lambda_.1} parent=0 // pred_region
    _
  $region41: #{_lambda_.1} parent=0 // pred_fallthru
    _
  // Predicated region
  $region42: #{_lambda_.1} parent=0 // pred_check
    _
  $region43: #{_lambda_.1} parent=0 // pred_check_branch
    %39 = sbr.rel (0) target = $region45
  $region44: #{_lambda_.1} parent=0 // pred_region
    _
  $region45: #{_lambda_.1} parent=0 // pred_fallthru
    _
  %v40 = vld [vmem:[%s0] sm:$0xff]
  %v41 = vld [vmem:[%s0 + $0x8] sm:$0xff]
  %v42 = vld [vmem:[%s0 + $0x10] sm:$0xff]
  %v43 = vld [vmem:[%s0 + $0x18] sm:$0xff]
  %v44 = vld [vmem:[%s0 + $0x20] sm:$0xff]
  %v45 = vld [vmem:[%s0 + $0x28] sm:$0xff]
  %v46 = vld [vmem:[%s0 + $0x30] sm:$0xff]
  %v47 = vld [vmem:[%s0 + $0x38] sm:$0xff]
  %v48 = vld [vmem:[%s0 + $0x40] sm:$0xff]
  %v49 = vld [vmem:[%s0 + $0x48] sm:$0xff]
  %v50 = vld [vmem:[%s0 + $0x50] sm:$0xff]
  %v51 = vld [vmem:[%s0 + $0x58] sm:$0xff]
  %v52 = vld [vmem:[%s0 + $0x60] sm:$0xff]
  %v53 = vld [vmem:[%s0 + $0x68] sm:$0xff]
  %v54 = vld [vmem:[%s0 + $0x70] sm:$0xff]
  %v55 = vld [vmem:[%s0 + $0x78] sm:$0xff]
  %v56 = vld [vmem:[%s2] sm:$0xff]
  %v57 = vld [vmem:[%s2 + $0x8] sm:$0xff]
  %v58 = vld [vmem:[%s1] sm:$0xff]
  %v59 = vld [vmem:[%s1 + $0x8] sm:$0xff]
  %v60 = vld [vmem:[%s1 + $0x10] sm:$0xff]
  %v61 = vld [vmem:[%s1 + $0x18] sm:$0xff]
  %v62 = vld [vmem:[%s1 + $0x20] sm:$0xff]
  %v63 = vld [vmem:[%s1 + $0x28] sm:$0xff]
  %v64 = vld [vmem:[%s1 + $0x30] sm:$0xff]
  %v65 = vld [vmem:[%s1 + $0x38] sm:$0xff]
  %v66 = vld [vmem:[%s1 + $0x40] sm:$0xff]
  %v67 = vld [vmem:[%s1 + $0x48] sm:$0xff]
  %v68 = vld [vmem:[%s1 + $0x50] sm:$0xff]
  %v69 = vld [vmem:[%s1 + $0x58] sm:$0xff]
  %v70 = vld [vmem:[%s1 + $0x60] sm:$0xff]
  %v71 = vld [vmem:[%s1 + $0x68] sm:$0xff]
  %v72 = vld [vmem:[%s1 + $0x70] sm:$0xff]
  %v73 = vld [vmem:[%s1 + $0x78] sm:$0xff]
  %v74 = vld [vmem:[%s3] sm:$0xff]
  %v75 = vld [vmem:[%s3 + $0x8] sm:$0xff]
  %vm76 = vcmask 130048
  %v78 = vsel %vm76, %v58, 0
  %v81 = vsel %vm76, %v59, 0
  %v84 = vsel %vm76, %v60, 0
  %v87 = vsel %vm76, %v61, 0
  %v90 = vsel %vm76, %v62, 0
  %v93 = vsel %vm76, %v63, 0
  %v96 = vsel %vm76, %v64, 0
  %v99 = vsel %vm76, %v65, 0
  %v102 = vsel %vm76, %v66, 0
  %v105 = vsel %vm76, %v67, 0
  %v108 = vsel %vm76, %v68, 0
  %v111 = vsel %vm76, %v69, 0
  %v114 = vsel %vm76, %v70, 0
  %v117 = vsel %vm76, %v71, 0
  %v120 = vsel %vm76, %v72, 0
  %v123 = vsel %vm76, %v73, 0
  %125 = vmatprep.subr.mxu0 0.0
  %126 = vmatpush1.msra.mxu0 %v74
  %127 = vmatprep.subr.mxu0 0.0
  %128 = vmatpush1.msra.mxu0 %v75
  %129 = vmatprep.subr.mxu0 0.0
  %130 = vmatpush1.msra.mxu0 0.0
  %131 = vmatprep.subr.mxu0 0.0
  %132 = vmatpush1.msra.mxu0 0.0
  %133 = vmatprep.subr.mxu0 0.0
  %134 = vmatpush1.msra.mxu0 0.0
  %135 = vmatprep.subr.mxu0 0.0
  %136 = vmatpush1.msra.mxu0 0.0
  %137 = vmatprep.subr.mxu0 0.0
  %138 = vmatpush1.msra.mxu0 0.0
  %139 = vmatprep.subr.mxu0 0.0
  %140 = vmatpush1.msra.mxu0 0.0
  %141 = vmatprep.subr.mxu0 0.0
  %142 = vmatpush1.msra.mxu0 0.0
  %143 = vmatprep.subr.mxu0 0.0
  %144 = vmatpush1.msra.mxu0 0.0
  %145 = vmatprep.subr.mxu0 0.0
  %146 = vmatpush1.msra.mxu0 0.0
  %147 = vmatprep.subr.mxu0 0.0
  %148 = vmatpush1.msra.mxu0 0.0
  %149 = vmatprep.subr.mxu0 0.0
  %150 = vmatpush1.msra.mxu0 0.0
  %151 = vmatprep.subr.mxu0 0.0
  %152 = vmatpush1.msra.mxu0 0.0
  %153 = vmatprep.subr.mxu0 0.0
  %154 = vmatpush1.msra.mxu0 0.0
  %155 = vmatprep.subr.mxu0 0.0
  %156 = vmatpush1.msra.mxu0 0.0
  %157 = vmatprep.subr.mxu0 0.0
  %158 = vmatpush1.msra.mxu0 0.0
  %159 = vmatprep.subr.mxu0 0.0
  %160 = vmatpush1.msra.mxu0 0.0
  %161 = vmatprep.subr.mxu0 0.0
  %162 = vmatpush1.msra.mxu0 0.0
  %163 = vmatprep.subr.mxu0 0.0
  %164 = vmatpush1.msra.mxu0 0.0
  %165 = vmatprep.subr.mxu0 0.0
  %166 = vmatpush1.msra.mxu0 0.0
  %167 = vmatprep.subr.mxu0 0.0
  %168 = vmatpush1.msra.mxu0 0.0
  %169 = vmatprep.subr.mxu0 0.0
  %170 = vmatpush1.msra.mxu0 0.0
  %171 = vmatprep.subr.mxu0 0.0
  %172 = vmatpush1.msra.mxu0 0.0
  %173 = vmatprep.subr.mxu0 0.0
  %174 = vmatpush1.msra.mxu0 0.0
  %175 = vmatprep.subr.mxu0 0.0
  %176 = vmatpush1.msra.mxu0 0.0
  %177 = vmatprep.subr.mxu0 0.0
  %178 = vmatpush1.msra.mxu0 0.0
  %179 = vmatprep.subr.mxu0 0.0
  %180 = vmatpush1.msra.mxu0 0.0
  %181 = vmatprep.subr.mxu0 0.0
  %182 = vmatpush1.msra.mxu0 0.0
  %183 = vmatprep.subr.mxu0 0.0
  %184 = vmatpush1.msra.mxu0 0.0
  %185 = vmatprep.subr.mxu0 0.0
  %186 = vmatpush1.msra.mxu0 0.0
  %187 = vmatprep.subr.mxu0 0.0
  %188 = vmatpush1.msra.mxu0 0.0
  %189 = vmatprep.mubr.f32.mxu0 0.0
  %190 = vmatmul.mubr.f32.gmra.mrb[0].mxu0 %v78
  %v191 = vpop.f32.mrb[0].mxu0
  %v192 = vadd.f32 0.0, %v191
  %v193 = vpop.f32.mrb[0].mxu0
  %194 = vmatprep.mubr.f32.mxu0 0.0
  %195 = vmatmul.mubr.f32.gmra.mrb[0].mxu0 %v81
  %v196 = vpop.f32.mrb[0].mxu0
  %v197 = vadd.f32 0.0, %v196
  %v198 = vpop.f32.mrb[0].mxu0
  %199 = vmatprep.mubr.f32.mxu0 0.0
  %200 = vmatmul.mubr.f32.gmra.mrb[0].mxu0 %v84
  %v201 = vpop.f32.mrb[0].mxu0
  %v202 = vadd.f32 0.0, %v201
  %v203 = vpop.f32.mrb[0].mxu0
  %204 = vmatprep.mubr.f32.mxu0 0.0
  %205 = vmatmul.mubr.f32.gmra.mrb[0].mxu0 %v87
  %v206 = vpop.f32.mrb[0].mxu0
  %v207 = vadd.f32 0.0, %v206
  %v208 = vpop.f32.mrb[0].mxu0
  %209 = vmatprep.mubr.f32.mxu0 0.0
  %210 = vmatmul.mubr.f32.gmra.mrb[0].mxu0 %v90
  %v211 = vpop.f32.mrb[0].mxu0
  %v212 = vadd.f32 0.0, %v211
  %v213 = vpop.f32.mrb[0].mxu0
  %214 = vmatprep.mubr.f32.mxu0 0.0
  %215 = vmatmul.mubr.f32.gmra.mrb[0].mxu0 %v93
  %v216 = vpop.f32.mrb[0].mxu0
  %v217 = vadd.f32 0.0, %v216
  %v218 = vpop.f32.mrb[0].mxu0
  %219 = vmatprep.mubr.f32.mxu0 0.0
  %220 = vmatmul.mubr.f32.gmra.mrb[0].mxu0 %v96
  %v221 = vpop.f32.mrb[0].mxu0
  %v222 = vadd.f32 0.0, %v221
  %v223 = vpop.f32.mrb[0].mxu0
  %224 = vmatprep.mubr.f32.mxu0 0.0
  %225 = vmatmul.mubr.f32.gmra.mrb[0].mxu0 %v99
  %v226 = vpop.f32.mrb[0].mxu0
  %v227 = vadd.f32 0.0, %v226
  %v228 = vpop.f32.mrb[0].mxu0
  %229 = vmatprep.mubr.f32.mxu0 0.0
  %230 = vmatmul.mubr.f32.gmra.mrb[0].mxu0 %v102
  %v231 = vpop.f32.mrb[0].mxu0
  %v232 = vadd.f32 0.0, %v231
  %v233 = vpop.f32.mrb[0].mxu0
  %234 = vmatprep.mubr.f32.mxu0 0.0
  %235 = vmatmul.mubr.f32.gmra.mrb[0].mxu0 %v105
  %v236 = vpop.f32.mrb[0].mxu0
  %v237 = vadd.f32 0.0, %v236
  %v238 = vpop.f32.mrb[0].mxu0
  %239 = vmatprep.mubr.f32.mxu0 0.0
  %240 = vmatmul.mubr.f32.gmra.mrb[0].mxu0 %v108
  %v241 = vpop.f32.mrb[0].mxu0
  %v242 = vadd.f32 0.0, %v241
  %v243 = vpop.f32.mrb[0].mxu0
  %244 = vmatprep.mubr.f32.mxu0 0.0
  %245 = vmatmul.mubr.f32.gmra.mrb[0].mxu0 %v111
  %v246 = vpop.f32.mrb[0].mxu0
  %v247 = vadd.f32 0.0, %v246
  %v248 = vpop.f32.mrb[0].mxu0
  %249 = vmatprep.mubr.f32.mxu0 0.0
  %250 = vmatmul.mubr.f32.gmra.mrb[0].mxu0 %v114
  %v251 = vpop.f32.mrb[0].mxu0
  %v252 = vadd.f32 0.0, %v251
  %v253 = vpop.f32.mrb[0].mxu0
  %254 = vmatprep.mubr.f32.mxu0 0.0
  %255 = vmatmul.mubr.f32.gmra.mrb[0].mxu0 %v117
  %v256 = vpop.f32.mrb[0].mxu0
  %v257 = vadd.f32 0.0, %v256
  %v258 = vpop.f32.mrb[0].mxu0
  %259 = vmatprep.mubr.f32.mxu0 0.0
  %260 = vmatmul.mubr.f32.gmra.mrb[0].mxu0 %v120
  %v261 = vpop.f32.mrb[0].mxu0
  %v262 = vadd.f32 0.0, %v261
  %v263 = vpop.f32.mrb[0].mxu0
  %264 = vmatprep.mubr.f32.mxu0 0.0
  %265 = vmatmul.mubr.f32.gmra.mrb[0].mxu0 %v123
  %v266 = vpop.f32.mrb[0].mxu0
  %v267 = vadd.f32 0.0, %v266
  %v268 = vpop.f32.mrb[0].mxu0
  %269 = vdwg.mxu0
  %v271 = vsel %vm76, %v40, 0
  %v274 = vsel %vm76, %v41, 0
  %v277 = vsel %vm76, %v42, 0
  %v280 = vsel %vm76, %v43, 0
  %v283 = vsel %vm76, %v44, 0
  %v286 = vsel %vm76, %v45, 0
  %v289 = vsel %vm76, %v46, 0
  %v292 = vsel %vm76, %v47, 0
  %v295 = vsel %vm76, %v48, 0
  %v298 = vsel %vm76, %v49, 0
  %v301 = vsel %vm76, %v50, 0
  %v304 = vsel %vm76, %v51, 0
  %v307 = vsel %vm76, %v52, 0
  %v310 = vsel %vm76, %v53, 0
  %v313 = vsel %vm76, %v54, 0
  %v316 = vsel %vm76, %v55, 0
  %318 = vmatprep.subr.mxu0 0.0
  %319 = vmatpush1.msra.mxu0 %v56
  %320 = vmatprep.subr.mxu0 0.0
  %321 = vmatpush1.msra.mxu0 %v57
  %322 = vmatprep.subr.mxu0 0.0
  %323 = vmatpush1.msra.mxu0 0.0
  %324 = vmatprep.subr.mxu0 0.0
  %325 = vmatpush1.msra.mxu0 0.0
  %326 = vmatprep.subr.mxu0 0.0
  %327 = vmatpush1.msra.mxu0 0.0
  %328 = vmatprep.subr.mxu0 0.0
  %329 = vmatpush1.msra.mxu0 0.0
  %330 = vmatprep.subr.mxu0 0.0
  %331 = vmatpush1.msra.mxu0 0.0
  %332 = vmatprep.subr.mxu0 0.0
  %333 = vmatpush1.msra.mxu0 0.0
  %334 = vmatprep.subr.mxu0 0.0
  %335 = vmatpush1.msra.mxu0 0.0
  %336 = vmatprep.subr.mxu0 0.0
  %337 = vmatpush1.msra.mxu0 0.0
  %338 = vmatprep.subr.mxu0 0.0
  %339 = vmatpush1.msra.mxu0 0.0
  %340 = vmatprep.subr.mxu0 0.0
  %341 = vmatpush1.msra.mxu0 0.0
  %342 = vmatprep.subr.mxu0 0.0
  %343 = vmatpush1.msra.mxu0 0.0
  %344 = vmatprep.subr.mxu0 0.0
  %345 = vmatpush1.msra.mxu0 0.0
  %346 = vmatprep.subr.mxu0 0.0
  %347 = vmatpush1.msra.mxu0 0.0
  %348 = vmatprep.subr.mxu0 0.0
  %349 = vmatpush1.msra.mxu0 0.0
  %350 = vmatprep.subr.mxu0 0.0
  %351 = vmatpush1.msra.mxu0 0.0
  %352 = vmatprep.subr.mxu0 0.0
  %353 = vmatpush1.msra.mxu0 0.0
  %354 = vmatprep.subr.mxu0 0.0
  %355 = vmatpush1.msra.mxu0 0.0
  %356 = vmatprep.subr.mxu0 0.0
  %357 = vmatpush1.msra.mxu0 0.0
  %358 = vmatprep.subr.mxu0 0.0
  %359 = vmatpush1.msra.mxu0 0.0
  %360 = vmatprep.subr.mxu0 0.0
  %361 = vmatpush1.msra.mxu0 0.0
  %362 = vmatprep.subr.mxu0 0.0
  %363 = vmatpush1.msra.mxu0 0.0
  %364 = vmatprep.subr.mxu0 0.0
  %365 = vmatpush1.msra.mxu0 0.0
  %366 = vmatprep.subr.mxu0 0.0
  %367 = vmatpush1.msra.mxu0 0.0
  %368 = vmatprep.subr.mxu0 0.0
  %369 = vmatpush1.msra.mxu0 0.0
  %370 = vmatprep.subr.mxu0 0.0
  %371 = vmatpush1.msra.mxu0 0.0
  %372 = vmatprep.subr.mxu0 0.0
  %373 = vmatpush1.msra.mxu0 0.0
  %374 = vmatprep.subr.mxu0 0.0
  %375 = vmatpush1.msra.mxu0 0.0
  %376 = vmatprep.subr.mxu0 0.0
  %377 = vmatpush1.msra.mxu0 0.0
  %378 = vmatprep.subr.mxu0 0.0
  %379 = vmatpush1.msra.mxu0 0.0
  %380 = vmatprep.subr.mxu0 0.0
  %381 = vmatpush1.msra.mxu0 0.0
  %382 = vmatprep.mubr.f32.mxu0 0.0
  %383 = vmatmul.mubr.f32.gmra.mrb[0].mxu0 %v271
  %v384 = vpop.f32.mrb[0].mxu0
  %v385 = vadd.f32 %v192, %v384
  %v386 = vpop.f32.mrb[0].mxu0
  %387 = vmatprep.mubr.f32.mxu0 0.0
  %388 = vmatmul.mubr.f32.gmra.mrb[0].mxu0 %v274
  %v389 = vpop.f32.mrb[0].mxu0
  %v390 = vadd.f32 %v197, %v389
  %v391 = vpop.f32.mrb[0].mxu0
  %392 = vmatprep.mubr.f32.mxu0 0.0
  %393 = vmatmul.mubr.f32.gmra.mrb[0].mxu0 %v277
  %v394 = vpop.f32.mrb[0].mxu0
  %v395 = vadd.f32 %v202, %v394
  %v396 = vpop.f32.mrb[0].mxu0
  %397 = vmatprep.mubr.f32.mxu0 0.0
  %398 = vmatmul.mubr.f32.gmra.mrb[0].mxu0 %v280
  %v399 = vpop.f32.mrb[0].mxu0
  %v400 = vadd.f32 %v207, %v399
  %v401 = vpop.f32.mrb[0].mxu0
  %402 = vmatprep.mubr.f32.mxu0 0.0
  %403 = vmatmul.mubr.f32.gmra.mrb[0].mxu0 %v283
  %v404 = vpop.f32.mrb[0].mxu0
  %v405 = vadd.f32 %v212, %v404
  %v406 = vpop.f32.mrb[0].mxu0
  %407 = vmatprep.mubr.f32.mxu0 0.0
  %408 = vmatmul.mubr.f32.gmra.mrb[0].mxu0 %v286
  %v409 = vpop.f32.mrb[0].mxu0
  %v410 = vadd.f32 %v217, %v409
  %v411 = vpop.f32.mrb[0].mxu0
  %412 = vmatprep.mubr.f32.mxu0 0.0
  %413 = vmatmul.mubr.f32.gmra.mrb[0].mxu0 %v289
  %v414 = vpop.f32.mrb[0].mxu0
  %v415 = vadd.f32 %v222, %v414
  %v416 = vpop.f32.mrb[0].mxu0
  %417 = vmatprep.mubr.f32.mxu0 0.0
  %418 = vmatmul.mubr.f32.gmra.mrb[0].mxu0 %v292
  %v419 = vpop.f32.mrb[0].mxu0
  %v420 = vadd.f32 %v227, %v419
  %v421 = vpop.f32.mrb[0].mxu0
  %422 = vmatprep.mubr.f32.mxu0 0.0
  %423 = vmatmul.mubr.f32.gmra.mrb[0].mxu0 %v295
  %v424 = vpop.f32.mrb[0].mxu0
  %v425 = vadd.f32 %v232, %v424
  %v426 = vpop.f32.mrb[0].mxu0
  %427 = vmatprep.mubr.f32.mxu0 0.0
  %428 = vmatmul.mubr.f32.gmra.mrb[0].mxu0 %v298
  %v429 = vpop.f32.mrb[0].mxu0
  %v430 = vadd.f32 %v237, %v429
  %v431 = vpop.f32.mrb[0].mxu0
  %432 = vmatprep.mubr.f32.mxu0 0.0
  %433 = vmatmul.mubr.f32.gmra.mrb[0].mxu0 %v301
  %v434 = vpop.f32.mrb[0].mxu0
  %v435 = vadd.f32 %v242, %v434
  %v436 = vpop.f32.mrb[0].mxu0
  %437 = vmatprep.mubr.f32.mxu0 0.0
  %438 = vmatmul.mubr.f32.gmra.mrb[0].mxu0 %v304
  %v439 = vpop.f32.mrb[0].mxu0
  %v440 = vadd.f32 %v247, %v439
  %v441 = vpop.f32.mrb[0].mxu0
  %442 = vmatprep.mubr.f32.mxu0 0.0
  %443 = vmatmul.mubr.f32.gmra.mrb[0].mxu0 %v307
  %v444 = vpop.f32.mrb[0].mxu0
  %v445 = vadd.f32 %v252, %v444
  %v446 = vpop.f32.mrb[0].mxu0
  %447 = vmatprep.mubr.f32.mxu0 0.0
  %448 = vmatmul.mubr.f32.gmra.mrb[0].mxu0 %v310
  %v449 = vpop.f32.mrb[0].mxu0
  %v450 = vadd.f32 %v257, %v449
  %v451 = vpop.f32.mrb[0].mxu0
  %452 = vmatprep.mubr.f32.mxu0 0.0
  %453 = vmatmul.mubr.f32.gmra.mrb[0].mxu0 %v313
  %v454 = vpop.f32.mrb[0].mxu0
  %v455 = vadd.f32 %v262, %v454
  %v456 = vpop.f32.mrb[0].mxu0
  %457 = vmatprep.mubr.f32.mxu0 0.0
  %458 = vmatmul.mubr.f32.gmra.mrb[0].mxu0 %v316
  %v459 = vpop.f32.mrb[0].mxu0
  %v460 = vadd.f32 %v267, %v459
  %v461 = vpop.f32.mrb[0].mxu0
  %462 = vdwg.mxu0
  %v463 = vld [vmem:[%s4] sm:$0x1]
  %v465 = vlaneseq
  %v466 = vshrl.u32 %v465, 7
  %v467 = vsub.s32 0, %v466
  %v468 = vrot.slane %v463, %v467
  %v470 = vadd.f32 %v385, %v468
  %v471 = vadd.f32 %v390, %v468
  %v472 = vadd.f32 %v395, %v468
  %v473 = vadd.f32 %v400, %v468
  %v474 = vadd.f32 %v405, %v468
  %v475 = vadd.f32 %v410, %v468
  %v476 = vadd.f32 %v415, %v468
  %v477 = vadd.f32 %v420, %v468
  %v478 = vadd.f32 %v425, %v468
  %v479 = vadd.f32 %v430, %v468
  %v480 = vadd.f32 %v435, %v468
  %v481 = vadd.f32 %v440, %v468
  %v482 = vadd.f32 %v445, %v468
  %v483 = vadd.f32 %v450, %v468
  %v484 = vadd.f32 %v455, %v468
  %v485 = vadd.f32 %v460, %v468
  %v486 = vxor.u32 %v470, 2147483648
  %v487 = vxor.u32 %v471, 2147483648
  %v488 = vxor.u32 %v472, 2147483648
  %v489 = vxor.u32 %v473, 2147483648
  %v490 = vxor.u32 %v474, 2147483648
  %v491 = vxor.u32 %v475, 2147483648
  %v492 = vxor.u32 %v476, 2147483648
  %v493 = vxor.u32 %v477, 2147483648
  %v494 = vxor.u32 %v478, 2147483648
  %v495 = vxor.u32 %v479, 2147483648
  %v496 = vxor.u32 %v480, 2147483648
  %v497 = vxor.u32 %v481, 2147483648
  %v498 = vxor.u32 %v482, 2147483648
  %v499 = vxor.u32 %v483, 2147483648
  %v500 = vxor.u32 %v484, 2147483648
  %v501 = vxor.u32 %v485, 2147483648
  %v502 = vmul.f32 %v486, 1.442695
  %v503 = vpow.pop %v502
  %v504 = vmul.f32 %v487, 1.442695
  %v505 = vpow.pop %v504
  %v506 = vmul.f32 %v488, 1.442695
  %v507 = vpow.pop %v506
  %v508 = vmul.f32 %v489, 1.442695
  %v509 = vpow.pop %v508
  %v510 = vmul.f32 %v490, 1.442695
  %v511 = vpow.pop %v510
  %v512 = vmul.f32 %v491, 1.442695
  %v513 = vpow.pop %v512
  %v514 = vmul.f32 %v492, 1.442695
  %v515 = vpow.pop %v514
  %v516 = vmul.f32 %v493, 1.442695
  %v517 = vpow.pop %v516
  %v518 = vmul.f32 %v494, 1.442695
  %v519 = vpow.pop %v518
  %v520 = vmul.f32 %v495, 1.442695
  %v521 = vpow.pop %v520
  %v522 = vmul.f32 %v496, 1.442695
  %v523 = vpow.pop %v522
  %v524 = vmul.f32 %v497, 1.442695
  %v525 = vpow.pop %v524
  %v526 = vmul.f32 %v498, 1.442695
  %v527 = vpow.pop %v526
  %v528 = vmul.f32 %v499, 1.442695
  %v529 = vpow.pop %v528
  %v530 = vmul.f32 %v500, 1.442695
  %v531 = vpow.pop %v530
  %v532 = vmul.f32 %v501, 1.442695
  %v533 = vpow.pop %v532
  %v534 = vadd.f32 %v503, 1.0
  %v535 = vadd.f32 %v505, 1.0
  %v536 = vadd.f32 %v507, 1.0
  %v537 = vadd.f32 %v509, 1.0
  %v538 = vadd.f32 %v511, 1.0
  %v539 = vadd.f32 %v513, 1.0
  %v540 = vadd.f32 %v515, 1.0
  %v541 = vadd.f32 %v517, 1.0
  %v542 = vadd.f32 %v519, 1.0
  %v543 = vadd.f32 %v521, 1.0
  %v544 = vadd.f32 %v523, 1.0
  %v545 = vadd.f32 %v525, 1.0
  %v546 = vadd.f32 %v527, 1.0
  %v547 = vadd.f32 %v529, 1.0
  %v548 = vadd.f32 %v531, 1.0
  %v549 = vadd.f32 %v533, 1.0
  %v550 = vrcp.pop %v534
  %v551 = vmul.f32 1.0, %v550
  %v552 = vrcp.pop %v535
  %v553 = vmul.f32 1.0, %v552
  %v554 = vrcp.pop %v536
  %v555 = vmul.f32 1.0, %v554
  %v556 = vrcp.pop %v537
  %v557 = vmul.f32 1.0, %v556
  %v558 = vrcp.pop %v538
  %v559 = vmul.f32 1.0, %v558
  %v560 = vrcp.pop %v539
  %v561 = vmul.f32 1.0, %v560
  %v562 = vrcp.pop %v540
  %v563 = vmul.f32 1.0, %v562
  %v564 = vrcp.pop %v541
  %v565 = vmul.f32 1.0, %v564
  %v566 = vrcp.pop %v542
  %v567 = vmul.f32 1.0, %v566
  %v568 = vrcp.pop %v543
  %v569 = vmul.f32 1.0, %v568
  %v570 = vrcp.pop %v544
  %v571 = vmul.f32 1.0, %v570
  %v572 = vrcp.pop %v545
  %v573 = vmul.f32 1.0, %v572
  %v574 = vrcp.pop %v546
  %v575 = vmul.f32 1.0, %v574
  %v576 = vrcp.pop %v547
  %v577 = vmul.f32 1.0, %v576
  %v578 = vrcp.pop %v548
  %v579 = vmul.f32 1.0, %v578
  %v580 = vrcp.pop %v549
  %v581 = vmul.f32 1.0, %v580
  %v582 = vld [vmem:[%s5] sm:$0xff]
  %v583 = vld [vmem:[%s5 + $0x8] sm:$0xff]
  %v584 = vld [vmem:[%s5 + $0x10] sm:$0xff]
  %v585 = vld [vmem:[%s5 + $0x18] sm:$0xff]
  %v586 = vld [vmem:[%s6] sm:$0x1]
  %v588 = vlaneseq
  %v589 = vshrl.u32 %v588, 7
  %v590 = vsub.s32 0, %v589
  %v591 = vrot.slane %v586, %v590
  %vm593 = vcmask 261120
  %v595 = vsel %vm593, %v551, 0
  %v598 = vsel %vm593, %v553, 0
  %v601 = vsel %vm593, %v555, 0
  %v604 = vsel %vm593, %v557, 0
  %v607 = vsel %vm593, %v559, 0
  %v610 = vsel %vm593, %v561, 0
  %v613 = vsel %vm593, %v563, 0
  %v616 = vsel %vm593, %v565, 0
  %v619 = vsel %vm593, %v567, 0
  %v622 = vsel %vm593, %v569, 0
  %v625 = vsel %vm593, %v571, 0
  %v628 = vsel %vm593, %v573, 0
  %v631 = vsel %vm593, %v575, 0
  %v634 = vsel %vm593, %v577, 0
  %v637 = vsel %vm593, %v579, 0
  %v640 = vsel %vm593, %v581, 0
  %642 = vmatprep.subr.mxu0 0.0
  %643 = vmatpush1.msra.mxu0 %v582
  %644 = vmatprep.subr.mxu0 0.0
  %645 = vmatpush1.msra.mxu0 %v583
  %646 = vmatprep.subr.mxu0 0.0
  %647 = vmatpush1.msra.mxu0 %v584
  %648 = vmatprep.subr.mxu0 0.0
  %649 = vmatpush1.msra.mxu0 %v585
  %650 = vmatprep.subr.mxu0 0.0
  %651 = vmatpush1.msra.mxu0 0.0
  %652 = vmatprep.subr.mxu0 0.0
  %653 = vmatpush1.msra.mxu0 0.0
  %654 = vmatprep.subr.mxu0 0.0
  %655 = vmatpush1.msra.mxu0 0.0
  %656 = vmatprep.subr.mxu0 0.0
  %657 = vmatpush1.msra.mxu0 0.0
  %658 = vmatprep.subr.mxu0 0.0
  %659 = vmatpush1.msra.mxu0 0.0
  %660 = vmatprep.subr.mxu0 0.0
  %661 = vmatpush1.msra.mxu0 0.0
  %662 = vmatprep.subr.mxu0 0.0
  %663 = vmatpush1.msra.mxu0 0.0
  %664 = vmatprep.subr.mxu0 0.0
  %665 = vmatpush1.msra.mxu0 0.0
  %666 = vmatprep.subr.mxu0 0.0
  %667 = vmatpush1.msra.mxu0 0.0
  %668 = vmatprep.subr.mxu0 0.0
  %669 = vmatpush1.msra.mxu0 0.0
  %670 = vmatprep.subr.mxu0 0.0
  %671 = vmatpush1.msra.mxu0 0.0
  %672 = vmatprep.subr.mxu0 0.0
  %673 = vmatpush1.msra.mxu0 0.0
  %674 = vmatprep.subr.mxu0 0.0
  %675 = vmatpush1.msra.mxu0 0.0
  %676 = vmatprep.subr.mxu0 0.0
  %677 = vmatpush1.msra.mxu0 0.0
  %678 = vmatprep.subr.mxu0 0.0
  %679 = vmatpush1.msra.mxu0 0.0
  %680 = vmatprep.subr.mxu0 0.0
  %681 = vmatpush1.msra.mxu0 0.0
  %682 = vmatprep.subr.mxu0 0.0
  %683 = vmatpush1.msra.mxu0 0.0
  %684 = vmatprep.subr.mxu0 0.0
  %685 = vmatpush1.msra.mxu0 0.0
  %686 = vmatprep.subr.mxu0 0.0
  %687 = vmatpush1.msra.mxu0 0.0
  %688 = vmatprep.subr.mxu0 0.0
  %689 = vmatpush1.msra.mxu0 0.0
  %690 = vmatprep.subr.mxu0 0.0
  %691 = vmatpush1.msra.mxu0 0.0
  %692 = vmatprep.subr.mxu0 0.0
  %693 = vmatpush1.msra.mxu0 0.0
  %694 = vmatprep.subr.mxu0 0.0
  %695 = vmatpush1.msra.mxu0 0.0
  %696 = vmatprep.subr.mxu0 0.0
  %697 = vmatpush1.msra.mxu0 0.0
  %698 = vmatprep.subr.mxu0 0.0
  %699 = vmatpush1.msra.mxu0 0.0
  %700 = vmatprep.subr.mxu0 0.0
  %701 = vmatpush1.msra.mxu0 0.0
  %702 = vmatprep.subr.mxu0 0.0
  %703 = vmatpush1.msra.mxu0 0.0
  %704 = vmatprep.subr.mxu0 0.0
  %705 = vmatpush1.msra.mxu0 0.0
  %706 = vmatprep.mubr.f32.mxu0 0.0
  %707 = vmatmul.mubr.f32.gmra.mrb[0].mxu0 %v595
  %v708 = vpop.f32.mrb[0].mxu0
  %v709 = vadd.f32 %v591, %v708
  %v710 = vpop.f32.mrb[0].mxu0
  %711 = vmatprep.mubr.f32.mxu0 0.0
  %712 = vmatmul.mubr.f32.gmra.mrb[0].mxu0 %v598
  %v713 = vpop.f32.mrb[0].mxu0
  %v714 = vadd.f32 %v591, %v713
  %v715 = vpop.f32.mrb[0].mxu0
  %716 = vmatprep.mubr.f32.mxu0 0.0
  %717 = vmatmul.mubr.f32.gmra.mrb[0].mxu0 %v601
  %v718 = vpop.f32.mrb[0].mxu0
  %v719 = vadd.f32 %v591, %v718
  %v720 = vpop.f32.mrb[0].mxu0
  %721 = vmatprep.mubr.f32.mxu0 0.0
  %722 = vmatmul.mubr.f32.gmra.mrb[0].mxu0 %v604
  %v723 = vpop.f32.mrb[0].mxu0
  %v724 = vadd.f32 %v591, %v723
  %v725 = vpop.f32.mrb[0].mxu0
  %726 = vmatprep.mubr.f32.mxu0 0.0
  %727 = vmatmul.mubr.f32.gmra.mrb[0].mxu0 %v607
  %v728 = vpop.f32.mrb[0].mxu0
  %v729 = vadd.f32 %v591, %v728
  %v730 = vpop.f32.mrb[0].mxu0
  %731 = vmatprep.mubr.f32.mxu0 0.0
  %732 = vmatmul.mubr.f32.gmra.mrb[0].mxu0 %v610
  %v733 = vpop.f32.mrb[0].mxu0
  %v734 = vadd.f32 %v591, %v733
  %v735 = vpop.f32.mrb[0].mxu0
  %736 = vmatprep.mubr.f32.mxu0 0.0
  %737 = vmatmul.mubr.f32.gmra.mrb[0].mxu0 %v613
  %v738 = vpop.f32.mrb[0].mxu0
  %v739 = vadd.f32 %v591, %v738
  %v740 = vpop.f32.mrb[0].mxu0
  %741 = vmatprep.mubr.f32.mxu0 0.0
  %742 = vmatmul.mubr.f32.gmra.mrb[0].mxu0 %v616
  %v743 = vpop.f32.mrb[0].mxu0
  %v744 = vadd.f32 %v591, %v743
  %v745 = vpop.f32.mrb[0].mxu0
  %746 = vmatprep.mubr.f32.mxu0 0.0
  %747 = vmatmul.mubr.f32.gmra.mrb[0].mxu0 %v619
  %v748 = vpop.f32.mrb[0].mxu0
  %v749 = vadd.f32 %v591, %v748
  %v750 = vpop.f32.mrb[0].mxu0
  %751 = vmatprep.mubr.f32.mxu0 0.0
  %752 = vmatmul.mubr.f32.gmra.mrb[0].mxu0 %v622
  %v753 = vpop.f32.mrb[0].mxu0
  %v754 = vadd.f32 %v591, %v753
  %v755 = vpop.f32.mrb[0].mxu0
  %756 = vmatprep.mubr.f32.mxu0 0.0
  %757 = vmatmul.mubr.f32.gmra.mrb[0].mxu0 %v625
  %v758 = vpop.f32.mrb[0].mxu0
  %v759 = vadd.f32 %v591, %v758
  %v760 = vpop.f32.mrb[0].mxu0
  %761 = vmatprep.mubr.f32.mxu0 0.0
  %762 = vmatmul.mubr.f32.gmra.mrb[0].mxu0 %v628
  %v763 = vpop.f32.mrb[0].mxu0
  %v764 = vadd.f32 %v591, %v763
  %v765 = vpop.f32.mrb[0].mxu0
  %766 = vmatprep.mubr.f32.mxu0 0.0
  %767 = vmatmul.mubr.f32.gmra.mrb[0].mxu0 %v631
  %v768 = vpop.f32.mrb[0].mxu0
  %v769 = vadd.f32 %v591, %v768
  %v770 = vpop.f32.mrb[0].mxu0
  %771 = vmatprep.mubr.f32.mxu0 0.0
  %772 = vmatmul.mubr.f32.gmra.mrb[0].mxu0 %v634
  %v773 = vpop.f32.mrb[0].mxu0
  %v774 = vadd.f32 %v591, %v773
  %v775 = vpop.f32.mrb[0].mxu0
  %776 = vmatprep.mubr.f32.mxu0 0.0
  %777 = vmatmul.mubr.f32.gmra.mrb[0].mxu0 %v637
  %v778 = vpop.f32.mrb[0].mxu0
  %v779 = vadd.f32 %v591, %v778
  %v780 = vpop.f32.mrb[0].mxu0
  %781 = vmatprep.mubr.f32.mxu0 0.0
  %782 = vmatmul.mubr.f32.gmra.mrb[0].mxu0 %v640
  %v783 = vpop.f32.mrb[0].mxu0
  %v784 = vadd.f32 %v591, %v783
  %v785 = vpop.f32.mrb[0].mxu0
  %786 = vdwg.mxu0
  %v787 = vxor.u32 %v709, 2147483648
  %v788 = vxor.u32 %v714, 2147483648
  %v789 = vxor.u32 %v719, 2147483648
  %v790 = vxor.u32 %v724, 2147483648
  %v791 = vxor.u32 %v729, 2147483648
  %v792 = vxor.u32 %v734, 2147483648
  %v793 = vxor.u32 %v739, 2147483648
  %v794 = vxor.u32 %v744, 2147483648
  %v795 = vxor.u32 %v749, 2147483648
  %v796 = vxor.u32 %v754, 2147483648
  %v797 = vxor.u32 %v759, 2147483648
  %v798 = vxor.u32 %v764, 2147483648
  %v799 = vxor.u32 %v769, 2147483648
  %v800 = vxor.u32 %v774, 2147483648
  %v801 = vxor.u32 %v779, 2147483648
  %v802 = vxor.u32 %v784, 2147483648
  %v803 = vmul.f32 %v787, 1.442695
  %v804 = vpow.pop %v803
  %v805 = vmul.f32 %v788, 1.442695
  %v806 = vpow.pop %v805
  %v807 = vmul.f32 %v789, 1.442695
  %v808 = vpow.pop %v807
  %v809 = vmul.f32 %v790, 1.442695
  %v810 = vpow.pop %v809
  %v811 = vmul.f32 %v791, 1.442695
  %v812 = vpow.pop %v811
  %v813 = vmul.f32 %v792, 1.442695
  %v814 = vpow.pop %v813
  %v815 = vmul.f32 %v793, 1.442695
  %v816 = vpow.pop %v815
  %v817 = vmul.f32 %v794, 1.442695
  %v818 = vpow.pop %v817
  %v819 = vmul.f32 %v795, 1.442695
  %v820 = vpow.pop %v819
  %v821 = vmul.f32 %v796, 1.442695
  %v822 = vpow.pop %v821
  %v823 = vmul.f32 %v797, 1.442695
  %v824 = vpow.pop %v823
  %v825 = vmul.f32 %v798, 1.442695
  %v826 = vpow.pop %v825
  %v827 = vmul.f32 %v799, 1.442695
  %v828 = vpow.pop %v827
  %v829 = vmul.f32 %v800, 1.442695
  %v830 = vpow.pop %v829
  %v831 = vmul.f32 %v801, 1.442695
  %v832 = vpow.pop %v831
  %v833 = vmul.f32 %v802, 1.442695
  %v834 = vpow.pop %v833
  %v835 = vadd.f32 %v804, 1.0
  %v836 = vadd.f32 %v806, 1.0
  %v837 = vadd.f32 %v808, 1.0
  %v838 = vadd.f32 %v810, 1.0
  %v839 = vadd.f32 %v812, 1.0
  %v840 = vadd.f32 %v814, 1.0
  %v841 = vadd.f32 %v816, 1.0
  %v842 = vadd.f32 %v818, 1.0
  %v843 = vadd.f32 %v820, 1.0
  %v844 = vadd.f32 %v822, 1.0
  %v845 = vadd.f32 %v824, 1.0
  %v846 = vadd.f32 %v826, 1.0
  %v847 = vadd.f32 %v828, 1.0
  %v848 = vadd.f32 %v830, 1.0
  %v849 = vadd.f32 %v832, 1.0
  %v850 = vadd.f32 %v834, 1.0
  %v851 = vrcp.pop %v835
  %v852 = vmul.f32 1.0, %v851
  %v853 = vrcp.pop %v836
  %v854 = vmul.f32 1.0, %v853
  %v855 = vrcp.pop %v837
  %v856 = vmul.f32 1.0, %v855
  %v857 = vrcp.pop %v838
  %v858 = vmul.f32 1.0, %v857
  %v859 = vrcp.pop %v839
  %v860 = vmul.f32 1.0, %v859
  %v861 = vrcp.pop %v840
  %v862 = vmul.f32 1.0, %v861
  %v863 = vrcp.pop %v841
  %v864 = vmul.f32 1.0, %v863
  %v865 = vrcp.pop %v842
  %v866 = vmul.f32 1.0, %v865
  %v867 = vrcp.pop %v843
  %v868 = vmul.f32 1.0, %v867
  %v869 = vrcp.pop %v844
  %v870 = vmul.f32 1.0, %v869
  %v871 = vrcp.pop %v845
  %v872 = vmul.f32 1.0, %v871
  %v873 = vrcp.pop %v846
  %v874 = vmul.f32 1.0, %v873
  %v875 = vrcp.pop %v847
  %v876 = vmul.f32 1.0, %v875
  %v877 = vrcp.pop %v848
  %v878 = vmul.f32 1.0, %v877
  %v879 = vrcp.pop %v849
  %v880 = vmul.f32 1.0, %v879
  %v881 = vrcp.pop %v850
  %v882 = vmul.f32 1.0, %v881
  %v883 = vld [vmem:[%s7] sm:$0xff]
  %v884 = vld [vmem:[%s7 + $0x8] sm:$0xff]
  %v885 = vld [vmem:[%s7 + $0x10] sm:$0xff]
  %v886 = vld [vmem:[%s7 + $0x18] sm:$0xff]
  %v887 = vld [vmem:[%s8] sm:$0x1]
  %v889 = vlaneseq
  %v890 = vshrl.u32 %v889, 7
  %v891 = vsub.s32 0, %v890
  %v892 = vrot.slane %v887, %v891
  %v895 = vsel %vm593, %v852, 0
  %v898 = vsel %vm593, %v854, 0
  %v901 = vsel %vm593, %v856, 0
  %v904 = vsel %vm593, %v858, 0
  %v907 = vsel %vm593, %v860, 0
  %v910 = vsel %vm593, %v862, 0
  %v913 = vsel %vm593, %v864, 0
  %v916 = vsel %vm593, %v866, 0
  %v919 = vsel %vm593, %v868, 0
  %v922 = vsel %vm593, %v870, 0
  %v925 = vsel %vm593, %v872, 0
  %v928 = vsel %vm593, %v874, 0
  %v931 = vsel %vm593, %v876, 0
  %v934 = vsel %vm593, %v878, 0
  %v937 = vsel %vm593, %v880, 0
  %v940 = vsel %vm593, %v882, 0
  %942 = vmatprep.subr.mxu0 0.0
  %943 = vmatpush1.msra.mxu0 %v883
  %944 = vmatprep.subr.mxu0 0.0
  %945 = vmatpush1.msra.mxu0 %v884
  %946 = vmatprep.subr.mxu0 0.0
  %947 = vmatpush1.msra.mxu0 %v885
  %948 = vmatprep.subr.mxu0 0.0
  %949 = vmatpush1.msra.mxu0 %v886
  %950 = vmatprep.subr.mxu0 0.0
  %951 = vmatpush1.msra.mxu0 0.0
  %952 = vmatprep.subr.mxu0 0.0
  %953 = vmatpush1.msra.mxu0 0.0
  %954 = vmatprep.subr.mxu0 0.0
  %955 = vmatpush1.msra.mxu0 0.0
  %956 = vmatprep.subr.mxu0 0.0
  %957 = vmatpush1.msra.mxu0 0.0
  %958 = vmatprep.subr.mxu0 0.0
  %959 = vmatpush1.msra.mxu0 0.0
  %960 = vmatprep.subr.mxu0 0.0
  %961 = vmatpush1.msra.mxu0 0.0
  %962 = vmatprep.subr.mxu0 0.0
  %963 = vmatpush1.msra.mxu0 0.0
  %964 = vmatprep.subr.mxu0 0.0
  %965 = vmatpush1.msra.mxu0 0.0
  %966 = vmatprep.subr.mxu0 0.0
  %967 = vmatpush1.msra.mxu0 0.0
  %968 = vmatprep.subr.mxu0 0.0
  %969 = vmatpush1.msra.mxu0 0.0
  %970 = vmatprep.subr.mxu0 0.0
  %971 = vmatpush1.msra.mxu0 0.0
  %972 = vmatprep.subr.mxu0 0.0
  %973 = vmatpush1.msra.mxu0 0.0
  %974 = vmatprep.subr.mxu0 0.0
  %975 = vmatpush1.msra.mxu0 0.0
  %976 = vmatprep.subr.mxu0 0.0
  %977 = vmatpush1.msra.mxu0 0.0
  %978 = vmatprep.subr.mxu0 0.0
  %979 = vmatpush1.msra.mxu0 0.0
  %980 = vmatprep.subr.mxu0 0.0
  %981 = vmatpush1.msra.mxu0 0.0
  %982 = vmatprep.subr.mxu0 0.0
  %983 = vmatpush1.msra.mxu0 0.0
  %984 = vmatprep.subr.mxu0 0.0
  %985 = vmatpush1.msra.mxu0 0.0
  %986 = vmatprep.subr.mxu0 0.0
  %987 = vmatpush1.msra.mxu0 0.0
  %988 = vmatprep.subr.mxu0 0.0
  %989 = vmatpush1.msra.mxu0 0.0
  %990 = vmatprep.subr.mxu0 0.0
  %991 = vmatpush1.msra.mxu0 0.0
  %992 = vmatprep.subr.mxu0 0.0
  %993 = vmatpush1.msra.mxu0 0.0
  %994 = vmatprep.subr.mxu0 0.0
  %995 = vmatpush1.msra.mxu0 0.0
  %996 = vmatprep.subr.mxu0 0.0
  %997 = vmatpush1.msra.mxu0 0.0
  %998 = vmatprep.subr.mxu0 0.0
  %999 = vmatpush1.msra.mxu0 0.0
  %1000 = vmatprep.subr.mxu0 0.0
  %1001 = vmatpush1.msra.mxu0 0.0
  %1002 = vmatprep.subr.mxu0 0.0
  %1003 = vmatpush1.msra.mxu0 0.0
  %1004 = vmatprep.subr.mxu0 0.0
  %1005 = vmatpush1.msra.mxu0 0.0
  %1006 = vmatprep.mubr.f32.mxu0 0.0
  %1007 = vmatmul.mubr.f32.gmra.mrb[0].mxu0 %v895
  %v1008 = vpop.f32.mrb[0].mxu0
  %v1009 = vadd.f32 %v892, %v1008
  %v1010 = vpop.f32.mrb[0].mxu0
  %1011 = vmatprep.mubr.f32.mxu0 0.0
  %1012 = vmatmul.mubr.f32.gmra.mrb[0].mxu0 %v898
  %v1013 = vpop.f32.mrb[0].mxu0
  %v1014 = vadd.f32 %v892, %v1013
  %v1015 = vpop.f32.mrb[0].mxu0
  %1016 = vmatprep.mubr.f32.mxu0 0.0
  %1017 = vmatmul.mubr.f32.gmra.mrb[0].mxu0 %v901
  %v1018 = vpop.f32.mrb[0].mxu0
  %v1019 = vadd.f32 %v892, %v1018
  %v1020 = vpop.f32.mrb[0].mxu0
  %1021 = vmatprep.mubr.f32.mxu0 0.0
  %1022 = vmatmul.mubr.f32.gmra.mrb[0].mxu0 %v904
  %v1023 = vpop.f32.mrb[0].mxu0
  %v1024 = vadd.f32 %v892, %v1023
  %v1025 = vpop.f32.mrb[0].mxu0
  %1026 = vmatprep.mubr.f32.mxu0 0.0
  %1027 = vmatmul.mubr.f32.gmra.mrb[0].mxu0 %v907
  %v1028 = vpop.f32.mrb[0].mxu0
  %v1029 = vadd.f32 %v892, %v1028
  %v1030 = vpop.f32.mrb[0].mxu0
  %1031 = vmatprep.mubr.f32.mxu0 0.0
  %1032 = vmatmul.mubr.f32.gmra.mrb[0].mxu0 %v910
  %v1033 = vpop.f32.mrb[0].mxu0
  %v1034 = vadd.f32 %v892, %v1033
  %v1035 = vpop.f32.mrb[0].mxu0
  %1036 = vmatprep.mubr.f32.mxu0 0.0
  %1037 = vmatmul.mubr.f32.gmra.mrb[0].mxu0 %v913
  %v1038 = vpop.f32.mrb[0].mxu0
  %v1039 = vadd.f32 %v892, %v1038
  %v1040 = vpop.f32.mrb[0].mxu0
  %1041 = vmatprep.mubr.f32.mxu0 0.0
  %1042 = vmatmul.mubr.f32.gmra.mrb[0].mxu0 %v916
  %v1043 = vpop.f32.mrb[0].mxu0
  %v1044 = vadd.f32 %v892, %v1043
  %v1045 = vpop.f32.mrb[0].mxu0
  %1046 = vmatprep.mubr.f32.mxu0 0.0
  %1047 = vmatmul.mubr.f32.gmra.mrb[0].mxu0 %v919
  %v1048 = vpop.f32.mrb[0].mxu0
  %v1049 = vadd.f32 %v892, %v1048
  %v1050 = vpop.f32.mrb[0].mxu0
  %1051 = vmatprep.mubr.f32.mxu0 0.0
  %1052 = vmatmul.mubr.f32.gmra.mrb[0].mxu0 %v922
  %v1053 = vpop.f32.mrb[0].mxu0
  %v1054 = vadd.f32 %v892, %v1053
  %v1055 = vpop.f32.mrb[0].mxu0
  %1056 = vmatprep.mubr.f32.mxu0 0.0
  %1057 = vmatmul.mubr.f32.gmra.mrb[0].mxu0 %v925
  %v1058 = vpop.f32.mrb[0].mxu0
  %v1059 = vadd.f32 %v892, %v1058
  %v1060 = vpop.f32.mrb[0].mxu0
  %1061 = vmatprep.mubr.f32.mxu0 0.0
  %1062 = vmatmul.mubr.f32.gmra.mrb[0].mxu0 %v928
  %v1063 = vpop.f32.mrb[0].mxu0
  %v1064 = vadd.f32 %v892, %v1063
  %v1065 = vpop.f32.mrb[0].mxu0
  %1066 = vmatprep.mubr.f32.mxu0 0.0
  %1067 = vmatmul.mubr.f32.gmra.mrb[0].mxu0 %v931
  %v1068 = vpop.f32.mrb[0].mxu0
  %v1069 = vadd.f32 %v892, %v1068
  %v1070 = vpop.f32.mrb[0].mxu0
  %1071 = vmatprep.mubr.f32.mxu0 0.0
  %1072 = vmatmul.mubr.f32.gmra.mrb[0].mxu0 %v934
  %v1073 = vpop.f32.mrb[0].mxu0
  %v1074 = vadd.f32 %v892, %v1073
  %v1075 = vpop.f32.mrb[0].mxu0
  %1076 = vmatprep.mubr.f32.mxu0 0.0
  %1077 = vmatmul.mubr.f32.gmra.mrb[0].mxu0 %v937
  %v1078 = vpop.f32.mrb[0].mxu0
  %v1079 = vadd.f32 %v892, %v1078
  %v1080 = vpop.f32.mrb[0].mxu0
  %1081 = vmatprep.mubr.f32.mxu0 0.0
  %1082 = vmatmul.mubr.f32.gmra.mrb[0].mxu0 %v940
  %v1083 = vpop.f32.mrb[0].mxu0
  %v1084 = vadd.f32 %v892, %v1083
  %v1085 = vpop.f32.mrb[0].mxu0
  %1086 = vdwg.mxu0
  %v1087 = vxor.u32 %v1009, 2147483648
  %v1088 = vxor.u32 %v1014, 2147483648
  %v1089 = vxor.u32 %v1019, 2147483648
  %v1090 = vxor.u32 %v1024, 2147483648
  %v1091 = vxor.u32 %v1029, 2147483648
  %v1092 = vxor.u32 %v1034, 2147483648
  %v1093 = vxor.u32 %v1039, 2147483648
  %v1094 = vxor.u32 %v1044, 2147483648
  %v1095 = vxor.u32 %v1049, 2147483648
  %v1096 = vxor.u32 %v1054, 2147483648
  %v1097 = vxor.u32 %v1059, 2147483648
  %v1098 = vxor.u32 %v1064, 2147483648
  %v1099 = vxor.u32 %v1069, 2147483648
  %v1100 = vxor.u32 %v1074, 2147483648
  %v1101 = vxor.u32 %v1079, 2147483648
  %v1102 = vxor.u32 %v1084, 2147483648
  %v1103 = vmul.f32 %v1087, 1.442695
  %v1104 = vpow.pop %v1103
  %v1105 = vmul.f32 %v1088, 1.442695
  %v1106 = vpow.pop %v1105
  %v1107 = vmul.f32 %v1089, 1.442695
  %v1108 = vpow.pop %v1107
  %v1109 = vmul.f32 %v1090, 1.442695
  %v1110 = vpow.pop %v1109
  %v1111 = vmul.f32 %v1091, 1.442695
  %v1112 = vpow.pop %v1111
  %v1113 = vmul.f32 %v1092, 1.442695
  %v1114 = vpow.pop %v1113
  %v1115 = vmul.f32 %v1093, 1.442695
  %v1116 = vpow.pop %v1115
  %v1117 = vmul.f32 %v1094, 1.442695
  %v1118 = vpow.pop %v1117
  %v1119 = vmul.f32 %v1095, 1.442695
  %v1120 = vpow.pop %v1119
  %v1121 = vmul.f32 %v1096, 1.442695
  %v1122 = vpow.pop %v1121
  %v1123 = vmul.f32 %v1097, 1.442695
  %v1124 = vpow.pop %v1123
  %v1125 = vmul.f32 %v1098, 1.442695
  %v1126 = vpow.pop %v1125
  %v1127 = vmul.f32 %v1099, 1.442695
  %v1128 = vpow.pop %v1127
  %v1129 = vmul.f32 %v1100, 1.442695
  %v1130 = vpow.pop %v1129
  %v1131 = vmul.f32 %v1101, 1.442695
  %v1132 = vpow.pop %v1131
  %v1133 = vmul.f32 %v1102, 1.442695
  %v1134 = vpow.pop %v1133
  %v1135 = vadd.f32 %v1104, 1.0
  %v1136 = vadd.f32 %v1106, 1.0
  %v1137 = vadd.f32 %v1108, 1.0
  %v1138 = vadd.f32 %v1110, 1.0
  %v1139 = vadd.f32 %v1112, 1.0
  %v1140 = vadd.f32 %v1114, 1.0
  %v1141 = vadd.f32 %v1116, 1.0
  %v1142 = vadd.f32 %v1118, 1.0
  %v1143 = vadd.f32 %v1120, 1.0
  %v1144 = vadd.f32 %v1122, 1.0
  %v1145 = vadd.f32 %v1124, 1.0
  %v1146 = vadd.f32 %v1126, 1.0
  %v1147 = vadd.f32 %v1128, 1.0
  %v1148 = vadd.f32 %v1130, 1.0
  %v1149 = vadd.f32 %v1132, 1.0
  %v1150 = vadd.f32 %v1134, 1.0
  %v1151 = vrcp.pop %v1135
  %v1152 = vmul.f32 1.0, %v1151
  %v1153 = vrcp.pop %v1136
  %v1154 = vmul.f32 1.0, %v1153
  %v1155 = vrcp.pop %v1137
  %v1156 = vmul.f32 1.0, %v1155
  %v1157 = vrcp.pop %v1138
  %v1158 = vmul.f32 1.0, %v1157
  %v1159 = vrcp.pop %v1139
  %v1160 = vmul.f32 1.0, %v1159
  %v1161 = vrcp.pop %v1140
  %v1162 = vmul.f32 1.0, %v1161
  %v1163 = vrcp.pop %v1141
  %v1164 = vmul.f32 1.0, %v1163
  %v1165 = vrcp.pop %v1142
  %v1166 = vmul.f32 1.0, %v1165
  %v1167 = vrcp.pop %v1143
  %v1168 = vmul.f32 1.0, %v1167
  %v1169 = vrcp.pop %v1144
  %v1170 = vmul.f32 1.0, %v1169
  %v1171 = vrcp.pop %v1145
  %v1172 = vmul.f32 1.0, %v1171
  %v1173 = vrcp.pop %v1146
  %v1174 = vmul.f32 1.0, %v1173
  %v1175 = vrcp.pop %v1147
  %v1176 = vmul.f32 1.0, %v1175
  %v1177 = vrcp.pop %v1148
  %v1178 = vmul.f32 1.0, %v1177
  %v1179 = vrcp.pop %v1149
  %v1180 = vmul.f32 1.0, %v1179
  %v1181 = vrcp.pop %v1150
  %v1182 = vmul.f32 1.0, %v1181
  %v1183 = vld [vmem:[%s9] sm:$0x1]
  %v1185 = vlaneseq
  %v1186 = vshrl.u32 %v1185, 7
  %v1187 = vsub.s32 0, %v1186
  %v1188 = vrot.slane %v1183, %v1187
  %v1190 = vmul.f32 %v1152, %v1188
  %v1191 = vmul.f32 %v1154, %v1188
  %v1192 = vmul.f32 %v1156, %v1188
  %v1193 = vmul.f32 %v1158, %v1188
  %v1194 = vmul.f32 %v1160, %v1188
  %v1195 = vmul.f32 %v1162, %v1188
  %v1196 = vmul.f32 %v1164, %v1188
  %v1197 = vmul.f32 %v1166, %v1188
  %v1198 = vmul.f32 %v1168, %v1188
  %v1199 = vmul.f32 %v1170, %v1188
  %v1200 = vmul.f32 %v1172, %v1188
  %v1201 = vmul.f32 %v1174, %v1188
  %v1202 = vmul.f32 %v1176, %v1188
  %v1203 = vmul.f32 %v1178, %v1188
  %v1204 = vmul.f32 %v1180, %v1188
  %v1205 = vmul.f32 %v1182, %v1188
  %v1206 = vsel %vm593, %v1190, 0.0
  %1207 = vadd.xlane.f32.xlu0 %v1206
  %v1208 = vpop.xlane.xlu0 %1207
  %v1209 = vsel %vm593, %v1191, 0.0
  %1210 = vadd.xlane.f32.xlu0 %v1209
  %v1211 = vpop.xlane.xlu0 %1210
  %v1212 = vsel %vm593, %v1192, 0.0
  %1213 = vadd.xlane.f32.xlu0 %v1212
  %v1214 = vpop.xlane.xlu0 %1213
  %v1215 = vsel %vm593, %v1193, 0.0
  %1216 = vadd.xlane.f32.xlu0 %v1215
  %v1217 = vpop.xlane.xlu0 %1216
  %v1218 = vsel %vm593, %v1194, 0.0
  %1219 = vadd.xlane.f32.xlu0 %v1218
  %v1220 = vpop.xlane.xlu0 %1219
  %v1221 = vsel %vm593, %v1195, 0.0
  %1222 = vadd.xlane.f32.xlu0 %v1221
  %v1223 = vpop.xlane.xlu0 %1222
  %v1224 = vsel %vm593, %v1196, 0.0
  %1225 = vadd.xlane.f32.xlu0 %v1224
  %v1226 = vpop.xlane.xlu0 %1225
  %v1227 = vsel %vm593, %v1197, 0.0
  %1228 = vadd.xlane.f32.xlu0 %v1227
  %v1229 = vpop.xlane.xlu0 %1228
  %v1230 = vsel %vm593, %v1198, 0.0
  %1231 = vadd.xlane.f32.xlu0 %v1230
  %v1232 = vpop.xlane.xlu0 %1231
  %v1233 = vsel %vm593, %v1199, 0.0
  %1234 = vadd.xlane.f32.xlu0 %v1233
  %v1235 = vpop.xlane.xlu0 %1234
  %v1236 = vsel %vm593, %v1200, 0.0
  %1237 = vadd.xlane.f32.xlu0 %v1236
  %v1238 = vpop.xlane.xlu0 %1237
  %v1239 = vsel %vm593, %v1201, 0.0
  %1240 = vadd.xlane.f32.xlu0 %v1239
  %v1241 = vpop.xlane.xlu0 %1240
  %v1242 = vsel %vm593, %v1202, 0.0
  %1243 = vadd.xlane.f32.xlu0 %v1242
  %v1244 = vpop.xlane.xlu0 %1243
  %v1245 = vsel %vm593, %v1203, 0.0
  %1246 = vadd.xlane.f32.xlu0 %v1245
  %v1247 = vpop.xlane.xlu0 %1246
  %v1248 = vsel %vm593, %v1204, 0.0
  %1249 = vadd.xlane.f32.xlu0 %v1248
  %v1250 = vpop.xlane.xlu0 %1249
  %v1251 = vsel %vm593, %v1205, 0.0
  %1252 = vadd.xlane.f32.xlu0 %v1251
  %v1253 = vpop.xlane.xlu0 %1252
  %v1254 = vld [vmem:[#allocation2] sm:$0x1]
  %1256 = vset.pattern.permute.xlu0 0
  %1257 = vperm.xlu0 %1256, %v1254
  %v1258 = vpop.permute.xlu0 %1257
  %v1260 = vlaneseq
  %v1261 = vshrl.u32 %v1260, 7
  %v1262 = vsub.s32 0, %v1261
  %v1263 = vrot.slane %v1258, %v1262
  %v1264 = vadd.f32 %v1208, %v1263
  %v1265 = vadd.f32 %v1211, %v1263
  %v1266 = vadd.f32 %v1214, %v1263
  %v1267 = vadd.f32 %v1217, %v1263
  %v1268 = vadd.f32 %v1220, %v1263
  %v1269 = vadd.f32 %v1223, %v1263
  %v1270 = vadd.f32 %v1226, %v1263
  %v1271 = vadd.f32 %v1229, %v1263
  %v1272 = vadd.f32 %v1232, %v1263
  %v1273 = vadd.f32 %v1235, %v1263
  %v1274 = vadd.f32 %v1238, %v1263
  %v1275 = vadd.f32 %v1241, %v1263
  %v1276 = vadd.f32 %v1244, %v1263
  %v1277 = vadd.f32 %v1247, %v1263
  %v1278 = vadd.f32 %v1250, %v1263
  %v1279 = vadd.f32 %v1253, %v1263
  %v1296 = vlaneseq
  %v1297 = vand.u32 %v1296, 127
  %v1298 = vlaneseq
  %v1299 = vshrl.u32 %v1298, 7
  %v1300 = vsub.s32 %v1297, %v1299
  %v1301 = vrot.slane %v1264, %v1300
  %v1302 = vadd.s32 %v1297, 4294967288
  %v1303 = vlaneseq
  %v1304 = vshrl.u32 %v1303, 7
  %v1305 = vsub.s32 %v1302, %v1304
  %v1306 = vrot.slane %v1265, %v1305
  %vm1307 = vcmask 130112
  %v1308 = vsel %vm1307, %v1306, %v1301
  %v1309 = vadd.s32 %v1297, 4294967280
  %v1310 = vlaneseq
  %v1311 = vshrl.u32 %v1310, 7
  %v1312 = vsub.s32 %v1309, %v1311
  %v1313 = vrot.slane %v1266, %v1312
  %vm1314 = vcmask 195712
  %v1315 = vsel %vm1314, %v1313, %v1308
  %v1316 = vadd.s32 %v1297, 4294967272
  %v1317 = vlaneseq
  %v1318 = vshrl.u32 %v1317, 7
  %v1319 = vsub.s32 %v1316, %v1318
  %v1320 = vrot.slane %v1267, %v1319
  %vm1321 = vcmask 261312
  %v1322 = vsel %vm1321, %v1320, %v1315
  %v1323 = vadd.s32 %v1297, 4294967264
  %v1324 = vlaneseq
  %v1325 = vshrl.u32 %v1324, 7
  %v1326 = vsub.s32 %v1323, %v1325
  %v1327 = vrot.slane %v1268, %v1326
  %vm1328 = vcmask 326912
  %v1329 = vsel %vm1328, %v1327, %v1322
  %v1330 = vadd.s32 %v1297, 4294967256
  %v1331 = vlaneseq
  %v1332 = vshrl.u32 %v1331, 7
  %v1333 = vsub.s32 %v1330, %v1332
  %v1334 = vrot.slane %v1269, %v1333
  %vm1335 = vcmask 392512
  %v1336 = vsel %vm1335, %v1334, %v1329
  %v1337 = vadd.s32 %v1297, 4294967248
  %v1338 = vlaneseq
  %v1339 = vshrl.u32 %v1338, 7
  %v1340 = vsub.s32 %v1337, %v1339
  %v1341 = vrot.slane %v1270, %v1340
  %vm1342 = vcmask 458112
  %v1343 = vsel %vm1342, %v1341, %v1336
  %v1344 = vadd.s32 %v1297, 4294967240
  %v1345 = vlaneseq
  %v1346 = vshrl.u32 %v1345, 7
  %v1347 = vsub.s32 %v1344, %v1346
  %v1348 = vrot.slane %v1271, %v1347
  %vm1349 = vcmask 523712
  %v1350 = vsel %vm1349, %v1348, %v1343
  %v1351 = vadd.s32 %v1297, 4294967232
  %v1352 = vlaneseq
  %v1353 = vshrl.u32 %v1352, 7
  %v1354 = vsub.s32 %v1351, %v1353
  %v1355 = vrot.slane %v1272, %v1354
  %vm1356 = vcmask 589312
  %v1357 = vsel %vm1356, %v1355, %v1350
  %v1358 = vadd.s32 %v1297, 4294967224
  %v1359 = vlaneseq
  %v1360 = vshrl.u32 %v1359, 7
  %v1361 = vsub.s32 %v1358, %v1360
  %v1362 = vrot.slane %v1273, %v1361
  %vm1363 = vcmask 654912
  %v1364 = vsel %vm1363, %v1362, %v1357
  %v1365 = vadd.s32 %v1297, 4294967216
  %v1366 = vlaneseq
  %v1367 = vshrl.u32 %v1366, 7
  %v1368 = vsub.s32 %v1365, %v1367
  %v1369 = vrot.slane %v1274, %v1368
  %vm1370 = vcmask 720512
  %v1371 = vsel %vm1370, %v1369, %v1364
  %v1372 = vadd.s32 %v1297, 4294967208
  %v1373 = vlaneseq
  %v1374 = vshrl.u32 %v1373, 7
  %v1375 = vsub.s32 %v1372, %v1374
  %v1376 = vrot.slane %v1275, %v1375
  %vm1377 = vcmask 786112
  %v1378 = vsel %vm1377, %v1376, %v1371
  %v1379 = vadd.s32 %v1297, 4294967200
  %v1380 = vlaneseq
  %v1381 = vshrl.u32 %v1380, 7
  %v1382 = vsub.s32 %v1379, %v1381
  %v1383 = vrot.slane %v1276, %v1382
  %vm1384 = vcmask 851712
  %v1385 = vsel %vm1384, %v1383, %v1378
  %v1386 = vadd.s32 %v1297, 4294967192
  %v1387 = vlaneseq
  %v1388 = vshrl.u32 %v1387, 7
  %v1389 = vsub.s32 %v1386, %v1388
  %v1390 = vrot.slane %v1277, %v1389
  %vm1391 = vcmask 917312
  %v1392 = vsel %vm1391, %v1390, %v1385
  %v1393 = vadd.s32 %v1297, 4294967184
  %v1394 = vlaneseq
  %v1395 = vshrl.u32 %v1394, 7
  %v1396 = vsub.s32 %v1393, %v1395
  %v1397 = vrot.slane %v1278, %v1396
  %vm1398 = vcmask 982912
  %v1399 = vsel %vm1398, %v1397, %v1392
  %v1400 = vadd.s32 %v1297, 4294967176
  %v1401 = vlaneseq
  %v1402 = vshrl.u32 %v1401, 7
  %v1403 = vsub.s32 %v1400, %v1402
  %v1404 = vrot.slane %v1279, %v1403
  %vm1405 = vcmask 1048512
  %v1406 = vsel %vm1405, %v1404, %v1399
  %1408 = vst [vmem:[%s11] sm:$0x1] %v1406
  // Predicated region
  $region46: #{_lambda_.1} parent=0 // pred_check
    _
  $region47: #{_lambda_.1} parent=0 // pred_check_branch
    %1410 = sbr.rel (0) target = $region49
  $region48: #{_lambda_.1} parent=0 // pred_region
    _
  $region49: #{_lambda_.1} parent=0 // pred_fallthru
    _
  // Predicated region
  $region50: #{_lambda_.1} parent=0 // pred_check
    _
  $region51: #{_lambda_.1} parent=0 // pred_check_branch
    %1412 = sbr.rel (0) target = $region53
  $region52: #{_lambda_.1} parent=0 // pred_region
    _
  $region53: #{_lambda_.1} parent=0 // pred_fallthru
    _

</llo_original>
